<compile_context>
chip_gen: v6e
topology: v6e:2x2x1
jax: 0.10.0
libtpu: 0.0.40
codegen_flags: <defaults>
</compile_context>

<pallas_src>
import functools

import jax
import jax.numpy as jnp
from jax.experimental import pallas as pl
from jax.experimental.pallas import tpu as pltpu

COMPUTE_DTYPE = jnp.bfloat16   # MXU operand dtype (accumulation is f32 in-kernel)
OUT_DTYPE = jnp.float32        # module output dtype (could be bf16 if downstream allows)

# Candidate M-tile sizes (rows of the folded B*num_patches dim).  512 rows in bf16 with
# K,E up to ~1k keeps 2x(tm*K + tm*E) double-buffered tiles far below the 16 MiB default
# scoped-VMEM limit of v5e (and the 32 MiB of v6e / v7x).
_TM_CANDIDATES = (512, 448, 384, 320, 256, 192, 128, 64, 32, 16, 8)


# ----------------------------- fused projection kernel -----------------------------
def _proj_kernel(xp_ref, w_ref, b_ref, o_ref):
    # (tm, K) @ (K, E) on the MXU, f32 accumulation; bias add in f32; cast on store.
    acc = jnp.dot(xp_ref[...], w_ref[...], preferred_element_type=jnp.float32)
    o_ref[...] = (acc + b_ref[...]).astype(o_ref.dtype)


# ------------------------------- one-time weight prep ------------------------------
def prepare_proj_params(conv_w, conv_b):
    """Init-side prep: Conv2d weight (E, C, p, p) -> matmul weight (C*p*p, E) in bf16,
    bias -> (1, E) f32 row.  Done once, NOT per forward call."""
    embed_dim, in_chans, ph, pw = conv_w.shape
    w_mat = conv_w.reshape(embed_dim, in_chans * ph * pw).T.astype(COMPUTE_DTYPE)
    b_row = conv_b.reshape(1, embed_dim).astype(jnp.float32)
    return w_mat, b_row


def _extract_patches(x, patch_size):
    """NCHW -> (B*num_patches, C*p*p); flatten order (c, ph, pw) matches Conv2d weights."""
    B, C, H, W = x.shape
    p = patch_size
    x = x.reshape(B, C, H // p, p, W // p, p)
    x = x.transpose(0, 2, 4, 1, 3, 5)          # (B, Hp, Wp, C, p, p)
    return x.reshape(B * (H // p) * (W // p), C * p * p)


# -------------------------------------- forward -------------------------------------
@functools.partial(jax.jit, static_argnames=("patch_size", "flatten"))
def patch_embed(x, w_mat, b_row, *, patch_size, flatten=True):
    """PatchEmbed.forward: Conv2d(k=s=patch)+bias, flatten(2).transpose(1,2), no_norm."""
    B, C, H, W = x.shape
    num_patches = (H // patch_size) * (W // patch_size)
    K, E = w_mat.shape
    BN = B * num_patches

    # bf16 activation operand; XLA may fuse this transpose/reshape/cast into the Pallas
    # input DMA thanks to allow_input_fusion below (no xp HBM round-trip).
    xp = _extract_patches(x, patch_size).astype(COMPUTE_DTYPE)     # (BN, K)

    fuse = dict(allow_input_fusion=[True, False, False])           # only the activation

    if BN <= _TM_CANDIDATES[0]:
        tm = None
    else:
        tm = next((t for t in _TM_CANDIDATES if BN % t == 0), None)
        # TODO(synk): ragged BN (no candidate divisor) falls back to the whole-VMEM path;
        # pad BN to a tile multiple for very large ragged inputs.

    if tm is None:
        # Small problem: single invocation, no grid -> no pipeline prologue/epilogue or
        # per-step overhead; everything lives in VMEM for the one call.
        out = pl.pallas_call(
            _proj_kernel,
            out_shape=jax.ShapeDtypeStruct((BN, E), OUT_DTYPE),
            in_specs=[
                pl.BlockSpec(memory_space=pltpu.MemorySpace.VMEM),
                pl.BlockSpec(memory_space=pltpu.MemorySpace.VMEM),
                pl.BlockSpec(memory_space=pltpu.MemorySpace.VMEM),
            ],
            out_specs=pl.BlockSpec(memory_space=pltpu.MemorySpace.VMEM),
            compiler_params=pltpu.CompilerParams(**fuse),
        )(xp, w_mat, b_row)
    else:
        # Production-size path: tile the folded row dimension.  Weight/bias block index
        # is constant so they are loaded once; "parallel" lets v7x shard rows over 2 TCs.
        out = pl.pallas_call(
            _proj_kernel,
            out_shape=jax.ShapeDtypeStruct((BN, E), OUT_DTYPE),
            grid=(BN // tm,),
            in_specs=[
                pl.BlockSpec((tm, K), lambda i: (i, 0)),
                pl.BlockSpec((K, E), lambda i: (0, 0)),
                pl.BlockSpec((1, E), lambda i: (0, 0)),
            ],
            out_specs=pl.BlockSpec((tm, E), lambda i: (i, 0)),
            compiler_params=pltpu.CompilerParams(
                dimension_semantics=("parallel",), **fuse),
        )(xp, w_mat, b_row)

    # norm_type='no_norm' (module default) => identity.
    # TODO(synk): norm_type='ln'/'bn' variants of get_norm_linear are not implemented.
    if flatten:
        return out.reshape(B, num_patches, E)
    Hp, Wp = H // patch_size, W // patch_size
    return out.reshape(B, Hp, Wp, E).transpose(0, 3, 1, 2)


# ------------------ pure-JAX reference (PyTorch Conv2d k=s=patch) -------------------
def patch_embed_reference(x, conv_w, conv_b, patch_size):
    B, C, H, W = x.shape
    E = conv_w.shape[0]
    y = jax.lax.conv_general_dilated(
        x, conv_w, window_strides=(patch_size, patch_size), padding="VALID",
        dimension_numbers=("NCHW", "OIHW", "NCHW"))
    y = y + conv_b.reshape(1, E, 1, 1)
    n = (H // patch_size) * (W // patch_size)
    return y.reshape(B, E, n).transpose(0, 2, 1)


if __name__ == "__main__":
    key = jax.random.PRNGKey(0)
    kw, kb, kx = jax.random.split(key, 3)

    # Small demo config consistent with the module; embed_dim is a 128-multiple so the
    # output stores are lane-dense (perf review).
    BATCH, IN_CHANS, IMG, PATCH, EMBED = 2, 3, 16, 4, 128
    NUM_PATCHES = (IMG // PATCH) ** 2

    conv_w = jax.random.normal(kw, (EMBED, IN_CHANS, PATCH, PATCH), jnp.float32) * 0.02
    conv_b = jax.random.normal(kb, (EMBED,), jnp.float32) * 0.02
    x = jax.random.normal(kx, (BATCH, IN_CHANS, IMG, IMG), jnp.float32)

    # One-time (init) weight prep, hoisted out of the forward.
    w_mat, b_row = prepare_proj_params(conv_w, conv_b)

    # Path 1: small problem -> gridless whole-VMEM kernel.
    out = jax.block_until_ready(patch_embed(x, w_mat, b_row, patch_size=PATCH))
    assert out.shape == (BATCH, NUM_PATCHES, EMBED), out.shape
    assert bool(jnp.all(jnp.isfinite(out)))
    ref = patch_embed_reference(x, conv_w, conv_b, PATCH)
    # bf16 MXU operands with f32 accumulation -> documented ~1e-2 tolerance vs f32 ref.
    assert bool(jnp.allclose(out, ref, atol=1e-2, rtol=1e-2)), \
        float(jnp.max(jnp.abs(out - ref)))

    # Path 2: larger batch/image -> exercises the M-tiled "parallel" grid path.
    B2, IMG2 = 16, 32                          # BN = 16 * 64 = 1024 -> tm=512, grid=(2,)
    x2 = jax.random.normal(jax.random.PRNGKey(1), (B2, IN_CHANS, IMG2, IMG2), jnp.float32)
    out2 = jax.block_until_ready(patch_embed(x2, w_mat, b_row, patch_size=PATCH))
    ref2 = patch_embed_reference(x2, conv_w, conv_b, PATCH)
    assert out2.shape == (B2, (IMG2 // PATCH) ** 2, EMBED), out2.shape
    assert bool(jnp.allclose(out2, ref2, atol=1e-2, rtol=1e-2)), \
        float(jnp.max(jnp.abs(out2 - ref2)))

    print("KERNEL_OK")
</pallas_src>

<mosaic_0001>
module attributes {stable_mosaic.version = 11 : i64} {
  func.func @_proj_kernel(%arg0: memref<32x48xbf16, #tpu.memory_space<vmem>>, %arg1: memref<48x128xbf16, #tpu.memory_space<vmem>>, %arg2: memref<1x128xf32, #tpu.memory_space<vmem>>, %arg3: memref<32x128xf32, #tpu.memory_space<vmem>>) attributes {dimension_semantics = [], scalar_prefetch = 0 : i64, scratch_operands = 0 : i64, tpu.core_type = #tpu.core_type<tc>} {
    %c0 = arith.constant 0 : index
    %c0_0 = arith.constant 0 : index
    %0 = vector.load %arg0[%c0, %c0_0] : memref<32x48xbf16, #tpu.memory_space<vmem>>, vector<32x48xbf16>
    %c0_1 = arith.constant 0 : index
    %c0_2 = arith.constant 0 : index
    %1 = vector.load %arg1[%c0_1, %c0_2] : memref<48x128xbf16, #tpu.memory_space<vmem>>, vector<48x128xbf16>
    %cst = arith.constant dense<0.000000e+00> : vector<32x128xf32>
    %2 = tpu.matmul %0, %1, %cst {dimension_numbers = #tpu.dot_dimension_numbers<[1], [0], [0], [1], [0, 0, 1, 1], [], []>} : vector<32x48xbf16>, vector<48x128xbf16>, vector<32x128xf32> -> vector<32x128xf32>
    %c0_3 = arith.constant 0 : index
    %c0_4 = arith.constant 0 : index
    %3 = vector.load %arg2[%c0_3, %c0_4] : memref<1x128xf32, #tpu.memory_space<vmem>>, vector<1x128xf32>
    %4 = vector.broadcast %3 : vector<1x128xf32> to vector<32x128xf32>
    %5 = arith.addf %2, %4 : vector<32x128xf32>
    %c0_5 = arith.constant 0 : index
    %c0_6 = arith.constant 0 : index
    %6 = vector.load %arg3[%c0_5, %c0_6] : memref<32x128xf32, #tpu.memory_space<vmem>>, vector<32x128xf32>
    tpu.vector_store %arg3[%c0_5, %c0_6], %5 {strides = array<i32>} : memref<32x128xf32, #tpu.memory_space<vmem>>, vector<32x128xf32>,
    return
  }
}

</mosaic_0001>

<llo_original>
// kernel: patch_embed.1
$region0: #{patch_embed.1}
  #allocation0 [shape = 'u32[]', space=smem, size = 0x4, offset = 0x4, fixed_abs, tag = 'smem constant byte address 0x4 - core index']
  #allocation1 [shape = 'u32[144,128]{1,0:T(1,128)}', space=vmem, size = 0x12000, scoped, tag = 'internal scratch']
  %s0 = inlined_call_operand.vmem [shape: bf16[32,48], index: 0, kind: input, shape index: {}]
  %s1 = inlined_call_operand.vmem [shape: bf16[48,128], index: 1, kind: input, shape index: {}]
  %s2 = inlined_call_operand.vmem [shape: f32[1,128], index: 2, kind: input, shape index: {}]
  %s3 = inlined_call_operand.hbm [shape: f32[32,128], index: 3, kind: output, shape index: {}]
  %s4 = sld [smem:[#allocation0]]
  $region22: #{patch_embed.1} parent=0
    _
  %s6 = ssub.s32 1, %s4
  %s7 = scalar_select 0, %s6, %s4
  $region1: #{patch_embed.1} parent=0
    #allocation2 [shape = 'u8[16384]{0}', space=vmem, size = 0x4000, scoped, tag = 'output window, operand 0, single buffered']
    #allocation3 [shape = 's32[1]{0}', space=sflag, size = 0x4, scoped, tag = 'scoped memory for patch_embed.1']
    %8 = vsyncpa [#allocation3], 0
    // Predicated region
    $region2: #{patch_embed.1} parent=1 // pred_check
      _
    $region3: #{patch_embed.1} parent=1 // pred_check_branch
      %10 = sbr.rel (0) target = $region5
    $region4: #{patch_embed.1} parent=1 // pred_region
      _
    $region5: #{patch_embed.1} parent=1 // pred_fallthru
      _
    // Predicated region
    $region6: #{patch_embed.1} parent=1 // pred_check
      _
    $region7: #{patch_embed.1} parent=1 // pred_check_branch
      %12 = sbr.rel (0) target = $region9
    $region8: #{patch_embed.1} parent=1 // pred_region
      _
    $region9: #{patch_embed.1} parent=1 // pred_fallthru
      _
    // Predicated region
    $region10: #{patch_embed.1} parent=1 // pred_check
      _
    $region11: #{patch_embed.1} parent=1 // pred_check_branch
      %14 = sbr.rel (0) target = $region13
    $region12: #{patch_embed.1} parent=1 // pred_region
      _
    $region13: #{patch_embed.1} parent=1 // pred_fallthru
      _
    %v16 = vld [vmem:[%s0] sm:$0xf]
    %v17 = vld [vmem:[%s0 + $0x4] sm:$0xf]
    %v18 = vld [vmem:[%s0 + $0x8] sm:$0xf]
    %v19 = vld [vmem:[%s0 + $0xc] sm:$0xf]
    %v20 = vld [vmem:[%s1] sm:$0xf]
    %v21 = vld [vmem:[%s1 + $0x4] sm:$0xf]
    %v22 = vld [vmem:[%s1 + $0x8] sm:$0xf]
    %v23 = vld [vmem:[%s1 + $0xc] sm:$0xf]
    %v24 = vld [vmem:[%s1 + $0x10] sm:$0xf]
    %v25 = vld [vmem:[%s1 + $0x14] sm:$0xf]
    %v26 = vld [vmem:[%s2] sm:$0x1]
    %v28 = vlaneseq
    %v29 = vshrl.u32 %v28, 7
    %v30 = vsub.s32 0, %v29
    %v31 = vrot.slane %v26, %v30
    %v37 = vunpack.c.l.b16 %v16
    %v38 = vunpack.c.l.b16 %v17
    %v39 = vunpack.c.l.b16 %v18
    %v40 = vunpack.c.l.b16 %v19
    %v41 = vpack.c.b16 %v38, %v37
    %v42 = vpack.c.b16 %v40, %v39
    %v49 = vunpack.c.l.b16 %v20
    %v50 = vunpack.c.l.b16 %v21
    %v51 = vunpack.c.l.b16 %v22
    %v52 = vunpack.c.l.b16 %v23
    %v53 = vunpack.c.l.b16 %v24
    %v54 = vunpack.c.l.b16 %v25
    %v55 = vpack.c.b16 %v50, %v49
    %v56 = vpack.c.b16 %v52, %v51
    %v57 = vpack.c.b16 %v54, %v53
    %vm61 = vcmask 392192
    %v63 = vsel %vm61, %v41, 0
    %v66 = vsel %vm61, %v42, 0
    %68 = vmatprep.subr.bf16.mxu0 0
    %69 = vmatpush1.bf16.msra.mxu0 0
    %70 = vmatprep.subr.bf16.mxu0 0
    %71 = vmatpush1.bf16.msra.mxu0 0
    %72 = vmatprep.subr.bf16.mxu0 0
    %73 = vmatpush1.bf16.msra.mxu0 0
    %74 = vmatprep.subr.bf16.mxu0 0
    %75 = vmatpush1.bf16.msra.mxu0 0
    %76 = vmatprep.subr.bf16.mxu0 0
    %77 = vmatpush1.bf16.msra.mxu0 0
    %78 = vmatprep.subr.bf16.mxu0 0
    %79 = vmatpush1.bf16.msra.mxu0 %v57
    %80 = vmatprep.subr.bf16.mxu0 0
    %81 = vmatpush1.bf16.msra.mxu0 %v56
    %82 = vmatprep.subr.bf16.mxu0 0
    %83 = vmatpush1.bf16.msra.mxu0 %v55
    %84 = vmatprep.subr.bf16.mxu0 0
    %85 = vmatpush2.bf16.msra.mxu0 0
    %86 = vmatprep.subr.bf16.mxu0 0
    %87 = vmatpush2.bf16.msra.mxu0 0
    %88 = vmatprep.subr.bf16.mxu0 0
    %89 = vmatpush2.bf16.msra.mxu0 0
    %90 = vmatprep.subr.bf16.mxu0 0
    %91 = vmatpush2.bf16.msra.mxu0 0
    %92 = vmatprep.subr.bf16.mxu0 0
    %93 = vmatpush2.bf16.msra.mxu0 0
    %94 = vmatprep.subr.bf16.mxu0 0
    %95 = vmatpush2.bf16.msra.mxu0 0
    %96 = vmatprep.subr.bf16.mxu0 0
    %97 = vmatpush2.bf16.msra.mxu0 0
    %98 = vmatprep.subr.bf16.mxu0 0
    %99 = vmatpush2.bf16.msra.mxu0 0
    %100 = vmatprep.mubr.bf16.mxu0 0
    %101 = vmatmul.mubr.bf16.gmra.mxu0 %v63
    %v102 = vpop.f32.mrf.mxu0
    %v103 = vadd.f32 %v31, %v102
    %v104 = vpop.f32.mrf.mxu0
    %v105 = vpop.f32.mrf.mxu0
    %v106 = vadd.f32 %v31, %v105
    %v107 = vpop.f32.mrf.mxu0
    %108 = vmatprep.mubr.bf16.mxu0 0
    %109 = vmatmul.mubr.bf16.gmra.mxu0 %v66
    %v110 = vpop.f32.mrf.mxu0
    %v111 = vadd.f32 %v31, %v110
    %v112 = vpop.f32.mrf.mxu0
    %v113 = vpop.f32.mrf.mxu0
    %v114 = vadd.f32 %v31, %v113
    %v115 = vpop.f32.mrf.mxu0
    %116 = vdwg.mxu0
    %117 = vst [vmem:[#allocation2] sm:$0xff] %v103
    %118 = vst [vmem:[#allocation2 + $0x8] sm:$0xff] %v106
    %119 = vst [vmem:[#allocation2 + $0x10] sm:$0xff] %v111
    %120 = vst [vmem:[#allocation2 + $0x18] sm:$0xff] %v114
    // Predicated region
    $region14: #{patch_embed.1} parent=1 // pred_check
      _
    $region15: #{patch_embed.1} parent=1 // pred_check_branch
      %122 = sbr.rel (0) target = $region17
    $region16: #{patch_embed.1} parent=1 // pred_region
      %s124 = ssub.s32 512, 512
      %125 = vsyncadd [#allocation3], %s124
      %s126 = sshll.u32 [#allocation2], 4
      %s127 = int_to_ptr.vmem [resolvable:$true] %s126
      %132 = dma.vmem_to_hbm [thread:$0]  %s127, 512, %s3, [#allocation3], 128, 128, 8
    $region17: #{patch_embed.1} parent=1 // pred_fallthru
      _
    // Predicated region
    $region18: #{patch_embed.1} parent=1 // pred_check
      _
    $region19: #{patch_embed.1} parent=1 // pred_check_branch
      %134 = sbr.rel (0) target = $region21
    $region20: #{patch_embed.1} parent=1 // pred_region
      %135 = dma.done [#allocation3], 512
    $region21: #{patch_embed.1} parent=1 // pred_fallthru
      _
    %136 = vsyncpa [#allocation3], 1

</llo_original>
